<compile_context>
chip_gen: v7x
topology: tpu7x:2x2x1
jax: 0.10.0
libtpu: 0.0.40
codegen_flags: <defaults>
</compile_context>

<pallas_src>
import functools

import jax
import jax.numpy as jnp
from jax import lax
from jax.experimental import pallas as pl
from jax.experimental.pallas import tpu as pltpu


def _round_up(x, m):
    return ((x + m - 1) // m) * m


# ----------------------------------------------------------------------------
# Fused multi-layer GCN kernel.
#   grid = (num_layers, num_row_tiles)   -- both sequential ("arbitrary").
#   hw_scr (2, n_pad, dmax) bf16 : ping-pong buffers holding HW_l = H_l @ W_l
#                                  (layer l reads slot l%2, writes slot 1-l%2).
#   a_scr  (n_pad, n_pad)  bf16 : full A_norm, copied from HBM once (cache_a).
# Per step (layer l, row tile t):
#   acc = A[t,:] @ HW_l                      (one big MXU matmul, f32 acc)
#   out = acc + b_l ; ReLU on hidden layers
#   if l < L-1:  HW_{l+1}[rows of t] = relu(out)_bf16 @ W_{l+1}
#   o[t] = out                               (tiled store; last layer wins)
# ----------------------------------------------------------------------------
def _gcn_fused_kernel(a_ref, hw0_ref, w_ref, b_ref, o_ref, *scratch,
                      tm, cache_a):
    if cache_a:
        hw_scr, a_scr = scratch
    else:
        (hw_scr,) = scratch
        a_scr = None

    layer = pl.program_id(0)
    tile = pl.program_id(1)
    n_layers = pl.num_programs(0)

    # One-time prologue: pull A (optional) and HW_0 = H0 @ W0 into VMEM.
    @pl.when((layer == 0) & (tile == 0))
    def _prologue():
        if cache_a:
            pltpu.sync_copy(a_ref, a_scr)
        pltpu.sync_copy(hw0_ref, hw_scr.at[0])

    row0 = pl.multiple_of(tile * tm, tm)
    rs = lax.rem(layer, 2)          # read slot holding HW_l
    ws = 1 - rs                     # write slot for HW_{l+1}

    if cache_a:
        a_tile = a_scr[pl.ds(row0, tm), :]
    else:
        a_tile = a_ref[...]

    acc = jnp.dot(a_tile, hw_scr[rs], preferred_element_type=jnp.float32)
    acc = acc + b_ref[...]                       # (1, dmax) f32 bias, broadcast
    relu = jnp.maximum(acc, 0.0)
    is_last = layer == n_layers - 1

    # Hidden layers store the ReLU'd activation; the last layer stores the raw
    # affine output.  Intermediate-layer stores to the same HBM block are
    # overwritten by the last layer's store, so correctness is unaffected.
    o_ref[...] = jnp.where(is_last, acc, relu)

    @pl.when(jnp.logical_not(is_last))
    def _update_hw():
        # Incrementally produce HW_{l+1} rows for this tile: folds the old
        # per-layer "H @ W at tile 0" stall into the row-tile loop.
        h_next = relu.astype(jnp.bfloat16)
        hw_next = jnp.dot(h_next, w_ref[...],
                          preferred_element_type=jnp.float32)
        hw_scr[ws, pl.ds(row0, tm), :] = hw_next.astype(jnp.bfloat16)
        # NOTE: padded node rows pick up relu(b) @ W here.  This is benign:
        # the corresponding (padded) columns of A are zero, so garbage never
        # contaminates real rows, and the output is sliced to [:n].


def gcn_forward_pallas(a_p, hw0_p, w_next_stack, b_stack, *, tm,
                       cache_budget_bytes=48 << 20):
    """Fused stacked-GCN forward on padded, pre-cast operands."""
    n_pad = a_p.shape[0]
    dmax = hw0_p.shape[1]
    n_layers = b_stack.shape[0]
    assert n_pad % tm == 0
    n_tiles = n_pad // tm

    # --- VMEM accounting: drives the A-caching decision and vmem_limit_bytes.
    hw_bytes = 2 * n_pad * dmax * 2                 # ping-pong HW scratch
    a_cache_bytes = n_pad * n_pad * 2               # resident A (single buffer)
    a_stream_bytes = 2 * tm * n_pad * 2             # double-buffered A strip
    w_bytes = 2 * dmax * dmax * 2
    b_bytes = 2 * dmax * 4
    out_bytes = 2 * tm * dmax * 4
    fixed = hw_bytes + w_bytes + b_bytes + out_bytes
    # Keep A resident only if it fits a conservative budget (works on v7x's
    # 64 MiB per-TC VMEM as well as v5e/v6e's 128 MiB).
    cache_a = fixed + a_cache_bytes <= cache_budget_bytes

    needed = fixed + (a_cache_bytes if cache_a else a_stream_bytes)
    vmem_limit = int(needed) + (16 << 20)           # headroom for internals

    if cache_a:
        a_spec = pl.BlockSpec(memory_space=pl.ANY)  # raw HBM ref, copied once
        scratch = [pltpu.VMEM((2, n_pad, dmax), jnp.bfloat16),
                   pltpu.VMEM((n_pad, n_pad), jnp.bfloat16)]
    else:
        # Fallback: stream (tm, n_pad) row strips (re-read once per layer).
        # TODO(synk): replace with a K-split grid axis for very large graphs.
        a_spec = pl.BlockSpec((tm, n_pad), lambda l, t: (t, 0))
        scratch = [pltpu.VMEM((2, n_pad, dmax), jnp.bfloat16)]

    a_hbm_bytes = a_cache_bytes if cache_a else n_layers * n_pad * n_pad * 2
    cost = pl.CostEstimate(
        flops=(2 * n_layers * n_pad * n_pad * dmax
               + 2 * max(n_layers - 1, 0) * n_pad * dmax * dmax),
        transcendentals=0,
        bytes_accessed=(a_hbm_bytes
                        + n_pad * dmax * 2                       # HW0
                        + n_layers * (dmax * dmax * 2 + dmax * 4)  # W, b
                        + n_layers * n_pad * dmax * 4))           # out stores

    kernel = functools.partial(_gcn_fused_kernel, tm=tm, cache_a=cache_a)
    out = pl.pallas_call(
        kernel,
        out_shape=jax.ShapeDtypeStruct((n_pad, dmax), jnp.float32),
        grid=(n_layers, n_tiles),
        in_specs=[
            a_spec,                                                  # A_norm
            pl.BlockSpec(memory_space=pl.ANY),                       # HW0 (HBM)
            pl.BlockSpec((None, dmax, dmax), lambda l, t: (l, 0, 0)),  # W_{l+1}
            pl.BlockSpec((None, 1, dmax), lambda l, t: (l, 0, 0)),     # b_l
        ],
        out_specs=pl.BlockSpec((tm, dmax), lambda l, t: (t, 0)),     # tiled out
        scratch_shapes=scratch,
        compiler_params=pltpu.CompilerParams(
            dimension_semantics=("arbitrary", "arbitrary"),
            vmem_limit_bytes=vmem_limit),
        cost_estimate=cost,
    )(a_p, hw0_p, w_next_stack, b_stack)
    return out


# ----------------------------------------------------------------------------
# Graph glue (plain JAX): normalized adjacency, built DIRECTLY at padded size
# in bf16 (no second N^2 copy).  Duplicate / reversed edges deduplicated; unit
# self loops added for real nodes only.
# ----------------------------------------------------------------------------
def _build_a_norm_padded(edges, num_nodes, n_pad):
    src, dst = edges[0], edges[1]
    a = jnp.zeros((n_pad, n_pad), jnp.float32).at[src, dst].set(1.0)
    a = jnp.maximum(a, a.T)                                    # undirected
    self_loop = (jnp.arange(n_pad) < num_nodes).astype(jnp.float32)
    a = jnp.maximum(a, jnp.diag(self_loop))                    # self loops
    deg = jnp.sum(a, axis=1)
    d_inv_sqrt = lax.rsqrt(jnp.maximum(deg, 1e-12))            # padded rows -> 0
    a = d_inv_sqrt[:, None] * a * d_inv_sqrt[None, :]
    return a.astype(jnp.bfloat16)


def _build_a_norm(edges, num_nodes):
    """Unpadded f32 A_norm (used only by the reference checks)."""
    src, dst = edges[0], edges[1]
    a = jnp.zeros((num_nodes, num_nodes), jnp.float32).at[src, dst].set(1.0)
    a = jnp.maximum(a, a.T)
    a = jnp.maximum(a, jnp.eye(num_nodes, dtype=jnp.float32))
    deg = jnp.sum(a, axis=1)
    d_inv_sqrt = lax.rsqrt(jnp.maximum(deg, 1e-12))
    return d_inv_sqrt[:, None] * a * d_inv_sqrt[None, :]


@jax.jit
def _ggecddcd_gcn_forward(edges, node_embed, weights, biases):
    n, in_dim = node_embed.shape
    dims = [in_dim] + [w.shape[1] for w in weights]
    out_dim = dims[-1]

    dmax = _round_up(max(dims), 128)       # lane-dense feature width
    # tm=256 fills the 256-wide MXU on v6e/v7x; v5e (128-wide) is indifferent.
    tm = min(256, _round_up(n, 128))
    n_pad = _round_up(n, tm)

    bf16 = jnp.bfloat16
    a_p = _build_a_norm_padded(edges, n, n_pad)

    h0_p = jnp.zeros((n_pad, dmax), bf16).at[:n, :in_dim].set(
        node_embed.astype(bf16))
    w_p = [jnp.zeros((dmax, dmax), bf16)
           .at[:w.shape[0], :w.shape[1]].set(w.astype(bf16)) for w in weights]

    # HW_0 = H0 @ W0 precomputed in XLA (cheap) -> no resident H0 input and no
    # layer-0 in-kernel H @ W stall.
    hw0_p = jnp.dot(h0_p, w_p[0],
                    preferred_element_type=jnp.float32).astype(bf16)

    # In-kernel weight for layer l is W_{l+1}; pad with a dummy (never read,
    # gated by pl.when(layer < L-1)) so the index map stays in bounds.
    w_next_stack = jnp.stack(w_p[1:] + [jnp.zeros((dmax, dmax), bf16)])
    b_stack = jnp.stack([
        jnp.zeros((1, dmax), jnp.float32)
        .at[:, :b.shape[-1]].set(b.reshape(1, -1).astype(jnp.float32))
        for b in biases])

    out = gcn_forward_pallas(a_p, hw0_p, w_next_stack, b_stack, tm=tm)
    return out[:n, :out_dim]


# ----------------------------------------------------------------------------
# Model wrapper mirroring GGEcdDcdBase(__init__/forward) for encoder='gcn'.
# ----------------------------------------------------------------------------
class GGEcdDcdBasePallas:
    def __init__(self, encoder, decoder, num_entity, num_relation,
                 input_dim, output_dim, hidden_dims=None, seed=0):
        if hidden_dims is None:
            hidden_dims = []
        assert encoder == "gcn", "only the 'gcn' encoder path is implemented"
        # TODO(synk): 'rgcn' / 'gat' encoder variants not implemented here.
        self.encoder = encoder
        self.decoder = decoder
        dims = [input_dim] + list(hidden_dims) + [output_dim]
        self.dims = dims

        key = jax.random.PRNGKey(seed)
        keys = jax.random.split(key, 2 * len(dims) + 2)

        # torch.nn.Embedding(num_entity, input_dim) -> deterministic init
        self.node_embed_weight = 0.02 * jax.random.normal(
            keys[0], (num_entity, input_dim), dtype=jnp.float32)

        # GCN layer weights / biases (Glorot-ish deterministic init)
        self.weights = []
        self.biases = []
        for li in range(len(dims) - 1):
            fan_in, fan_out = dims[li], dims[li + 1]
            scale = (2.0 / (fan_in + fan_out)) ** 0.5
            w = scale * jax.random.normal(
                keys[1 + li], (fan_in, fan_out), dtype=jnp.float32)
            b = jnp.zeros((1, fan_out), dtype=jnp.float32)
            self.weights.append(w)
            self.biases.append(b)

        # Decoder params (unused in forward, matching the reference module).
        if decoder in ("distmult", "transe"):
            self.rela_embed_weight = 0.02 * jax.random.normal(
                keys[-1], (num_relation, output_dim), dtype=jnp.float32)
        else:
            self.rela_embed_weight = None

    def forward(self, edges):
        if self.encoder == "gcn":
            return _ggecddcd_gcn_forward(
                edges, self.node_embed_weight,
                tuple(self.weights), tuple(self.biases))
        return None

    def __call__(self, edges):
        return self.forward(edges)


# ----------------------------------------------------------------------------
# References for sanity checking.
# ----------------------------------------------------------------------------
def _ref_forward_bf16(a_norm, h0, weights, biases):
    """Mirror the kernel's numerics (bf16 operands, f32 accumulate)."""
    ab = a_norm.astype(jnp.bfloat16)
    h = h0.astype(jnp.bfloat16)
    n_layers = len(weights)
    acc = None
    for li, (w, b) in enumerate(zip(weights, biases)):
        hw = jnp.dot(h, w.astype(jnp.bfloat16),
                     preferred_element_type=jnp.float32).astype(jnp.bfloat16)
        acc = jnp.dot(ab, hw, preferred_element_type=jnp.float32) + b
        if li < n_layers - 1:
            acc = jnp.maximum(acc, 0.0)
        h = acc.astype(jnp.bfloat16)
    return acc


def _ref_forward_f32(a_norm, h0, weights, biases):
    h = h0
    n_layers = len(weights)
    for li, (w, b) in enumerate(zip(weights, biases)):
        h = a_norm @ h @ w + b
        if li < n_layers - 1:
            h = jnp.maximum(h, 0.0)
    return h


if __name__ == "__main__":
    num_entity = 128
    num_relation = 8
    input_dim = 32
    hidden_dims = [64]
    output_dim = 32
    num_edges = 64

    model = GGEcdDcdBasePallas(
        encoder="gcn", decoder="distmult",
        num_entity=num_entity, num_relation=num_relation,
        input_dim=input_dim, output_dim=output_dim,
        hidden_dims=hidden_dims, seed=0)

    key = jax.random.PRNGKey(0)
    edges = jax.random.randint(key, (2, num_edges), 0, num_entity,
                               dtype=jnp.int32)

    h = jax.block_until_ready(model(edges))
    assert h.shape == (num_entity, output_dim)

    a_norm = _build_a_norm(edges, num_entity)
    h_bf16 = jax.block_until_ready(_ref_forward_bf16(
        a_norm, model.node_embed_weight, model.weights, model.biases))
    h_f32 = jax.block_until_ready(_ref_forward_f32(
        a_norm, model.node_embed_weight, model.weights, model.biases))

    # Tight check vs a reference applying the same bf16 casts as the kernel.
    assert jnp.allclose(h, h_bf16, atol=3e-4, rtol=3e-3), "mismatch vs bf16 ref"
    # Loose check vs the full f32 reference (bf16 operand rounding expected).
    assert jnp.allclose(h, h_f32, atol=2e-3, rtol=5e-2), "mismatch vs f32 ref"

    print("KERNEL_OK")
</pallas_src>

<mosaic_0001>
module attributes {stable_mosaic.version = 11 : i64} {
  func.func @_gcn_fused_kernel(%arg0: i32, %arg1: i32, %arg2: memref<128x128xbf16, #tpu.memory_space<any>>, %arg3: memref<128x128xbf16, #tpu.memory_space<any>>, %arg4: memref<1x128x128xbf16, #tpu.memory_space<vmem>>, %arg5: memref<1x1x128xf32, #tpu.memory_space<vmem>>, %arg6: memref<128x128xf32, #tpu.memory_space<vmem>>, %arg7: memref<2x128x128xbf16, #tpu.memory_space<vmem>>, %arg8: memref<128x128xbf16, #tpu.memory_space<vmem>>) attributes {dimension_semantics = [#tpu.dimension_semantics<arbitrary>, #tpu.dimension_semantics<arbitrary>], iteration_bounds = array<i64: 2, 1>, scalar_prefetch = 0 : i64, scratch_operands = 2 : i64, tpu.core_type = #tpu.core_type<tc>, window_params = [{}, {}, {transform_indices = @transform_2, window_bounds = array<i64: 1, 128, 128>}, {transform_indices = @transform_3, window_bounds = array<i64: 1, 1, 128>}, {transform_indices = @transform_4, window_bounds = array<i64: 128, 128>}]} {
    %c0_i32 = arith.constant 0 : i32
    %0 = arith.cmpi eq, %arg0, %c0_i32 : i32
    %c0_i32_0 = arith.constant 0 : i32
    %1 = arith.cmpi eq, %arg1, %c0_i32_0 : i32
    %2 = arith.andi %0, %1 : i1
    %3 = arith.extui %2 : i1 to i32
    %c0_i32_1 = arith.constant 0 : i32
    %4 = arith.cmpi ne, %3, %c0_i32_1 : i32
    scf.if %4 {
      "tpu.region"() ({
        %27 = tpu.sem_alloc : memref<!tpu.dma_semaphore, #tpu.memory_space<semaphore_mem>>
        tpu.enqueue_dma source(%arg2 : memref<128x128xbf16, #tpu.memory_space<any>>) target(%arg8 : memref<128x128xbf16, #tpu.memory_space<vmem>>) target_semaphore(%27 : memref<!tpu.dma_semaphore, #tpu.memory_space<semaphore_mem>>)
        tpu.wait_dma2 semaphore(%27 : memref<!tpu.dma_semaphore, #tpu.memory_space<semaphore_mem>>) src(%arg2 : memref<128x128xbf16, #tpu.memory_space<any>>) dst(%arg8 : memref<128x128xbf16, #tpu.memory_space<vmem>>)
        tpu.yield
      }) : () -> ()
      %c0_i32_12 = arith.constant 0 : i32
      "tpu.region"() ({
        %27 = tpu.sem_alloc : memref<!tpu.dma_semaphore, #tpu.memory_space<semaphore_mem>>
        %c0_i32_13 = arith.constant 0 : i32
        %c0_i32_14 = arith.constant 0 : i32
        %28 = tpu.memref_slice %arg7[%c0_i32_12, %c0_i32_13, %c0_i32_14] : memref<2x128x128xbf16, #tpu.memory_space<vmem>> -> memref<1x128x128xbf16, #tpu.memory_space<vmem>>
        %29 = tpu.memref_squeeze %28 : memref<1x128x128xbf16, #tpu.memory_space<vmem>> -> memref<128x128xbf16, #tpu.memory_space<vmem>>
        tpu.enqueue_dma source(%arg3 : memref<128x128xbf16, #tpu.memory_space<any>>) target(%29 : memref<128x128xbf16, #tpu.memory_space<vmem>>) target_semaphore(%27 : memref<!tpu.dma_semaphore, #tpu.memory_space<semaphore_mem>>)
        %c0_i32_15 = arith.constant 0 : i32
        %c0_i32_16 = arith.constant 0 : i32
        %30 = tpu.memref_slice %arg7[%c0_i32_12, %c0_i32_15, %c0_i32_16] : memref<2x128x128xbf16, #tpu.memory_space<vmem>> -> memref<1x128x128xbf16, #tpu.memory_space<vmem>>
        %31 = tpu.memref_squeeze %30 : memref<1x128x128xbf16, #tpu.memory_space<vmem>> -> memref<128x128xbf16, #tpu.memory_space<vmem>>
        tpu.wait_dma2 semaphore(%27 : memref<!tpu.dma_semaphore, #tpu.memory_space<semaphore_mem>>) src(%arg3 : memref<128x128xbf16, #tpu.memory_space<any>>) dst(%31 : memref<128x128xbf16, #tpu.memory_space<vmem>>)
        tpu.yield
      }) : () -> ()
    } else {
    }
    %c128_i32 = arith.constant 128 : i32
    %5 = arith.muli %arg1, %c128_i32 : i32
    %6 = tpu.assume_multiple %5, 128 : i32
    %c2_i32 = arith.constant 2 : i32
    %7 = arith.remsi %arg0, %c2_i32 : i32
    %c1_i32 = arith.constant 1 : i32
    %8 = arith.subi %c1_i32, %7 : i32
    %9 = arith.index_cast %6 : i32 to index
    %c0 = arith.constant 0 : index
    %10 = vector.load %arg8[%9, %c0] : memref<128x128xbf16, #tpu.memory_space<vmem>>, vector<128x128xbf16>
    %11 = arith.index_cast %7 : i32 to index
    %c0_2 = arith.constant 0 : index
    %c0_3 = arith.constant 0 : index
    %12 = vector.load %arg7[%11, %c0_2, %c0_3] : memref<2x128x128xbf16, #tpu.memory_space<vmem>>, vector<1x128x128xbf16>
    %13 = vector.shape_cast %12 : vector<1x128x128xbf16> to vector<128x128xbf16>
    %cst = arith.constant dense<0.000000e+00> : vector<128x128xf32>
    %14 = tpu.matmul %10, %13, %cst {dimension_numbers = #tpu.dot_dimension_numbers<[1], [0], [0], [1], [0, 0, 1, 1], [], []>} : vector<128x128xbf16>, vector<128x128xbf16>, vector<128x128xf32> -> vector<128x128xf32>
    %c0_4 = arith.constant 0 : index
    %c0_5 = arith.constant 0 : index
    %c0_6 = arith.constant 0 : index
    %15 = vector.load %arg5[%c0_4, %c0_5, %c0_6] : memref<1x1x128xf32, #tpu.memory_space<vmem>>, vector<1x1x128xf32>
    %16 = vector.shape_cast %15 : vector<1x1x128xf32> to vector<1x128xf32>
    %17 = vector.broadcast %16 : vector<1x128xf32> to vector<128x128xf32>
    %18 = arith.addf %14, %17 : vector<128x128xf32>
    %cst_7 = arith.constant 0.000000e+00 : f32
    %19 = vector.broadcast %cst_7 : f32 to vector<128x128xf32>
    %20 = arith.maximumf %18, %19 : vector<128x128xf32>
    %c1_i32_8 = arith.constant 1 : i32
    %21 = arith.cmpi eq, %arg0, %c1_i32_8 : i32
    %22 = arith.select %21, %18, %20 : vector<128x128xf32>
    %c0_9 = arith.constant 0 : index
    %c0_10 = arith.constant 0 : index
    %23 = vector.load %arg6[%c0_9, %c0_10] : memref<128x128xf32, #tpu.memory_space<vmem>>, vector<128x128xf32>
    tpu.vector_store %arg6[%c0_9, %c0_10], %22 {strides = array<i32>} : memref<128x128xf32, #tpu.memory_space<vmem>>, vector<128x128xf32>,
    %true = arith.constant true
    %24 = arith.xori %21, %true : i1
    %25 = arith.extui %24 : i1 to i32
    %c0_i32_11 = arith.constant 0 : i32
    %26 = arith.cmpi ne, %25, %c0_i32_11 : i32
    scf.if %26 {
      %27 = arith.truncf %20 : vector<128x128xf32> to vector<128x128xbf16>
      %c0_12 = arith.constant 0 : index
      %c0_13 = arith.constant 0 : index
      %c0_14 = arith.constant 0 : index
      %28 = vector.load %arg4[%c0_12, %c0_13, %c0_14] : memref<1x128x128xbf16, #tpu.memory_space<vmem>>, vector<1x128x128xbf16>
      %29 = vector.shape_cast %28 : vector<1x128x128xbf16> to vector<128x128xbf16>
      %cst_15 = arith.constant dense<0.000000e+00> : vector<128x128xf32>
      %30 = tpu.matmul %27, %29, %cst_15 {dimension_numbers = #tpu.dot_dimension_numbers<[1], [0], [0], [1], [0, 0, 1, 1], [], []>} : vector<128x128xbf16>, vector<128x128xbf16>, vector<128x128xf32> -> vector<128x128xf32>
      %31 = arith.truncf %30 : vector<128x128xf32> to vector<128x128xbf16>
      %32 = arith.index_cast %8 : i32 to index
      %33 = arith.index_cast %6 : i32 to index
      %c0_16 = arith.constant 0 : index
      %34 = vector.load %arg7[%32, %33, %c0_16] : memref<2x128x128xbf16, #tpu.memory_space<vmem>>, vector<1x128x128xbf16>
      %35 = vector.shape_cast %34 : vector<1x128x128xbf16> to vector<128x128xbf16>
      %36 = vector.shape_cast %31 : vector<128x128xbf16> to vector<1x128x128xbf16>
      tpu.vector_store %arg7[%32, %33, %c0_16], %36 {strides = array<i32>} : memref<2x128x128xbf16, #tpu.memory_space<vmem>>, vector<1x128x128xbf16>,
    } else {
    }
    return
  }
  func.func @transform_2(%arg0: i32, %arg1: i32) -> (i32, i32, i32) {
    %c0_i32 = arith.constant 0 : i32
    %c0_i32_0 = arith.constant 0 : i32
    %c0_i32_1 = arith.constant 0 : i32
    return %arg0, %c0_i32, %c0_i32_0 : i32, i32, i32
  }
  func.func @transform_3(%arg0: i32, %arg1: i32) -> (i32, i32, i32) {
    %c0_i32 = arith.constant 0 : i32
    %c0_i32_0 = arith.constant 0 : i32
    %c0_i32_1 = arith.constant 0 : i32
    return %arg0, %c0_i32, %c0_i32_0 : i32, i32, i32
  }
  func.func @transform_4(%arg0: i32, %arg1: i32) -> (i32, i32) {
    %c0_i32 = arith.constant 0 : i32
    %c0_i32_0 = arith.constant 0 : i32
    return %arg1, %c0_i32 : i32, i32
  }
}

</mosaic_0001>

<llo_original>
// kernel: _ggecddcd_gcn_forward.1
$region0: #{_ggecddcd_gcn_forward.1}
  #allocation0 [shape = 'u32[]', space=smem, size = 0x4, offset = 0x4, fixed_abs, tag = 'smem constant byte address 0x4 - core index']
  #allocation1 [shape = 'u32[144,128]{1,0:T(1,128)}', space=vmem, size = 0x12000, scoped, tag = 'internal scratch']
  #allocation2 [shape = 'bf16[2,128,128]{2,1,0:T(16,128)(2,1)}', space=vmem, size = 0x10000, scoped, tag = 'scratch operand']
  #allocation3 [shape = 'bf16[128,128]{1,0:T(16,128)(2,1)}', space=vmem, size = 0x8000, scoped, tag = 'scratch operand']
  #allocation5 [shape = 's32[]', space=sflag, size = 0x4, offset = 0, fixed_abs, tag = 'sflag constant byte address 0x0 - dummy sync flag']
  #allocation7 [shape = 's32[]', space=sflag, size = 0x4, offset = 0, fixed_abs, tag = 'sflag constant byte address 0x0 - dummy sync flag']
  %s0 = inlined_call_operand.vmem [shape: bf16[128,128], index: 0, kind: input, shape index: {}]
  %s1 = inlined_call_operand.vmem [shape: bf16[128,128], index: 1, kind: input, shape index: {}]
  %s2 = inlined_call_operand.vmem [shape: bf16[2,128,128], index: 2, kind: input, shape index: {}]
  %s3 = inlined_call_operand.vmem [shape: f32[2,1,128], index: 3, kind: input, shape index: {}]
  %s4 = inlined_call_operand.vmem [shape: f32[128,128], index: 4, kind: output, shape index: {}]
  %s5 = sld [smem:[#allocation0]]
  $region119: #{_ggecddcd_gcn_forward.1} parent=0
    _
  %s7 = ssub.s32 1, %s5
  %s8 = scalar_select 0, %s7, %s5
  loop: start=0, step=1, limit=4
  $region2: #{_ggecddcd_gcn_forward.1} parent=0 // loop_pre_header
    _
  $region3: #{_ggecddcd_gcn_forward.1} parent=0 // loop_header
    %s10 = sphi 0, %s14
    %p11 = scmp.ge.s32.totalorder %s10, 4
    %s17 = sphi 0, %s29
    %s18 = sphi 0, %s25
    %s19 = sphi 0, %s17
    %s20 = sphi 0, %s18
    %s21 = sphi 0, %s19
    %s22 = sphi 0, %s20
    %s32 = sphi 0, %s34
    %s35 = sphi 0, %s32
    %s36 = sphi 0, %s35
    %s52 = sphi 0, %s36
    %s58 = sphi 0, %s60
    %s61 = sphi 0, %s58
    %s62 = sphi 0, %s61
    %s78 = sphi 0, %s62
    %s84 = sphi 0, %s86
    %s87 = sphi 0, %s84
    %s88 = sphi 0, %s87
    %s104 = sphi 0, %s88
  $region4: #{_ggecddcd_gcn_forward.1} parent=0 // loop_header_branch
    %13 = sbr.rel (%p11) target = $region8
  $region5: #{_ggecddcd_gcn_forward.1} parent=0 // loop_body
    %s15 = ssub.s32 %s10, 1
    %s16 = ssub.s32 %s10, 2
    %s23 = sadd.s32 1, %s18
    %p24 = scmp.ge.s32.totalorder %s23, 1
    %s25 = scalar_select %p24, 0, %s23
    %s26 = sadd.s32 1, %s17
    %s27 = scalar_select %p24, %s26, %s17
    %p28 = scmp.ge.s32.totalorder %s27, 2
    %s29 = scalar_select %p28, 0, %s27
    %s30 = ssub.s32 %s17, %s29
    %p31 = scmp.eq.s32.totalorder %s30, 0
    %s33 = sadd.s32 %s32, 1
    %s34 = scalar_select %p31, %s32, %s33
    %p37 = pneg %p31
    %p38 = scmp.eq.s32.totalorder %s10, 1
    %p39 = por %p37, %p38
    %p40 = scmp.ne.s32.totalorder %s32, %s35
    %p41 = scmp.eq.s32.totalorder %s10, 0
    %p42 = por %p40, %p41
    %p43 = scmp.ne.s32.totalorder %s32, %s35
    %p44 = scmp.eq.s32.totalorder %s15, 1
    %p45 = por %p43, %p44
    %p46 = scmp.ne.s32.totalorder %s35, %s36
    %p47 = scmp.eq.s32.totalorder %s15, 0
    %p48 = por %p46, %p47
    %p49 = scmp.ne.s32.totalorder %s35, %s36
    %p50 = scmp.eq.s32.totalorder %s16, 1
    %p51 = por %p49, %p50
    %p53 = scmp.ne.s32.totalorder %s36, %s52
    %p54 = scmp.eq.s32.totalorder %s16, 0
    %p55 = por %p53, %p54
    %s56 = ssub.s32 %s17, %s29
    %p57 = scmp.eq.s32.totalorder %s56, 0
    %s59 = sadd.s32 %s58, 1
    %s60 = scalar_select %p57, %s58, %s59
    %p63 = pneg %p57
    %p64 = scmp.eq.s32.totalorder %s10, 1
    %p65 = por %p63, %p64
    %p66 = scmp.ne.s32.totalorder %s58, %s61
    %p67 = scmp.eq.s32.totalorder %s10, 0
    %p68 = por %p66, %p67
    %p69 = scmp.ne.s32.totalorder %s58, %s61
    %p70 = scmp.eq.s32.totalorder %s15, 1
    %p71 = por %p69, %p70
    %p72 = scmp.ne.s32.totalorder %s61, %s62
    %p73 = scmp.eq.s32.totalorder %s15, 0
    %p74 = por %p72, %p73
    %p75 = scmp.ne.s32.totalorder %s61, %s62
    %p76 = scmp.eq.s32.totalorder %s16, 1
    %p77 = por %p75, %p76
    %p79 = scmp.ne.s32.totalorder %s62, %s78
    %p80 = scmp.eq.s32.totalorder %s16, 0
    %p81 = por %p79, %p80
    %s82 = ssub.s32 %s18, %s25
    %p83 = scmp.eq.s32.totalorder %s82, 0
    %s85 = sadd.s32 %s84, 1
    %s86 = scalar_select %p83, %s84, %s85
    %p89 = pneg %p83
    %p90 = scmp.eq.s32.totalorder %s10, 1
    %p91 = por %p89, %p90
    %p92 = scmp.ne.s32.totalorder %s84, %s87
    %p93 = scmp.eq.s32.totalorder %s10, 0
    %p94 = por %p92, %p93
    %p95 = scmp.ne.s32.totalorder %s84, %s87
    %p96 = scmp.eq.s32.totalorder %s15, 1
    %p97 = por %p95, %p96
    %p98 = scmp.ne.s32.totalorder %s87, %s88
    %p99 = scmp.eq.s32.totalorder %s15, 0
    %p100 = por %p98, %p99
    %p101 = scmp.ne.s32.totalorder %s87, %s88
    %p102 = scmp.eq.s32.totalorder %s16, 1
    %p103 = por %p101, %p102
    %p105 = scmp.ne.s32.totalorder %s88, %s104
    %p106 = scmp.eq.s32.totalorder %s16, 0
    %p107 = por %p105, %p106
    %p108 = scmp.le.s32.totalorder 1, %s10
    %p109 = scmp.lt.s32.totalorder %s10, 3
    %p110 = pnand %p108, %p109
    %p111 = pneg %p110
    // Predicated region
    $region9: #{_ggecddcd_gcn_forward.1} parent=5 // pred_check
      _
    $region10: #{_ggecddcd_gcn_forward.1} parent=5 // pred_check_branch
      %113 = sbr.rel (%p110) target = $region12
    $region11: #{_ggecddcd_gcn_forward.1} parent=5 // pred_region
      %s114 = ssub.s32 %s10, 1
    $region12: #{_ggecddcd_gcn_forward.1} parent=5 // pred_fallthru
      _
    %p115 = scmp.lt.s32.totalorder %s10, 2
    // Predicated region
    $region13: #{_ggecddcd_gcn_forward.1} parent=5 // pred_check
      %p116 = pneg %p115
    $region14: #{_ggecddcd_gcn_forward.1} parent=5 // pred_check_branch
      %118 = sbr.rel (%p116) target = $region16
    $region15: #{_ggecddcd_gcn_forward.1} parent=5 // pred_region
      // Predicated region
      $region17: #{_ggecddcd_gcn_forward.1} parent=15 // pred_check
        %p119 = pneg %p42
      $region18: #{_ggecddcd_gcn_forward.1} parent=15 // pred_check_branch
        %121 = sbr.rel (%p119) target = $region20
      $region19: #{_ggecddcd_gcn_forward.1} parent=15 // pred_region
        %p122 = scmp.lt.s32.totalorder %s17, 1
        %s123 = scalar_select %p122, %s17, 1
        %s124 = smul.addr %s123, 16
        %s125 = smul.addr %s124, 4
        %s126 = scalar_lea.vmem %s2, %s125
      $region20: #{_ggecddcd_gcn_forward.1} parent=15 // pred_fallthru
        _
      // Predicated region
      $region21: #{_ggecddcd_gcn_forward.1} parent=15 // pred_check
        %p127 = pneg %p68
      $region22: #{_ggecddcd_gcn_forward.1} parent=15 // pred_check_branch
        %129 = sbr.rel (%p127) target = $region24
      $region23: #{_ggecddcd_gcn_forward.1} parent=15 // pred_region
        %p130 = scmp.lt.s32.totalorder %s17, 1
        %s131 = scalar_select %p130, %s17, 1
        %s132 = scalar_lea.vmem %s3, %s131
      $region24: #{_ggecddcd_gcn_forward.1} parent=15 // pred_fallthru
        _
    $region16: #{_ggecddcd_gcn_forward.1} parent=5 // pred_fallthru
      _
    %p133 = scmp.le.s32.totalorder 1, %s10
    %p134 = scmp.lt.s32.totalorder %s10, 3
    %p135 = pnand %p133, %p134
    %p136 = pneg %p135
    // Predicated region
    $region25: #{_ggecddcd_gcn_forward.1} parent=5 // pred_check
      _
    $region26: #{_ggecddcd_gcn_forward.1} parent=5 // pred_check_branch
      %138 = sbr.rel (%p135) target = $region28
    $region27: #{_ggecddcd_gcn_forward.1} parent=5 // pred_region
      %s139 = ssub.s32 %s10, 1
      %p140 = scmp.lt.s32.totalorder %s19, 1
      %s141 = scalar_select %p140, %s19, 1
      %s142 = smul.addr %s141, 16
      %s143 = smul.addr %s142, 4
      %s144 = scalar_lea.vmem %s2, %s143
      %p145 = pneg %p48
      %p146 = pneg %p45
      %p147 = scmp.lt.s32.totalorder %s19, 1
      %s148 = scalar_select %p147, %s19, 1
      %s149 = scalar_lea.vmem %s3, %s148
      %p150 = pneg %p74
      %p151 = pneg %p71
      %p152 = pneg %p100
      %p153 = pneg %p97
      %s154 = smul.u32 16, %s20
      %p155 = scmp.lt.s32.totalorder %s154, 15
      %s156 = scalar_select %p155, %s154, 15
      %s157 = smul.addr %s156, 8
      %s158 = scalar_lea.vmem %s4, %s157
      %p159 = scmp.lt.s32.totalorder %s19, 1
      %s160 = scalar_select %p159, %s19, 1
      %s161 = smul.addr %s160, 16
      %s162 = smul.addr %s161, 4
      %s163 = scalar_lea.vmem %s2, %s162
      %p164 = scmp.lt.s32.totalorder %s19, 1
      %s165 = scalar_select %p164, %s19, 1
      %s166 = scalar_lea.vmem %s3, %s165
      %s167 = smul.u32 16, %s20
      %p168 = scmp.lt.s32.totalorder %s167, 15
      %s169 = scalar_select %p168, %s167, 15
      %s170 = smul.addr %s169, 8
      %s171 = scalar_lea.vmem %s4, %s170
      %s172 = smul.u32 16, %s20
      %p174 = scmp.eq.s32.totalorder %s19, 0
      %p175 = scmp.eq.s32.totalorder %s20, 0
      %p176 = pnand %p174, %p175
      %p177 = pneg %p176
      // Predicated region
      $region29: #{_ggecddcd_gcn_forward.1} parent=27 // pred_check
        _
      $region30: #{_ggecddcd_gcn_forward.1} parent=27 // pred_check_branch
        %179 = sbr.rel (%p176) target = $region32
      $region31: #{_ggecddcd_gcn_forward.1} parent=27 // pred_region
        $region33: #{_ggecddcd_gcn_forward.1} parent=31
          #allocation4 [shape = 's32[1]{0}', space=sflag, size = 0x4, scoped, tag = 'scoped memory for _ggecddcd_gcn_forward.1']
          %p181 = scmp.lt.u32.totalorder 64, 8
          %p182 = pneg %p181
          // Predicated region
          $region34: #{_ggecddcd_gcn_forward.1} parent=33 // pred_check
            _
          $region35: #{_ggecddcd_gcn_forward.1} parent=33 // pred_check_branch
            %184 = sbr.rel (%p181) target = $region37
          $region36: #{_ggecddcd_gcn_forward.1} parent=33 // pred_region
            %s199 = sand.u32 64, 7
            %p200 = scmp.eq.s32.totalorder %s199, 0
            // Predicated region
            $region49: #{_ggecddcd_gcn_forward.1} parent=36 // pred_check
              %p201 = pneg %p200
            $region50: #{_ggecddcd_gcn_forward.1} parent=36 // pred_check_branch
              %203 = sbr.rel (%p201) target = $region52
            $region51: #{_ggecddcd_gcn_forward.1} parent=36 // pred_region
              loop: start=0, step=1, limit=1
              $region53: #{_ggecddcd_gcn_forward.1} parent=51 // loop_pre_header
                _
              $region54: #{_ggecddcd_gcn_forward.1} parent=51 // loop_header
                %s205 = sphi 0, %s209
                %p206 = scmp.ge.s32.totalorder %s205, 1
                %s210 = sphi %s0, %s0
                %s211 = sphi [#allocation3], [#allocation3]
              $region55: #{_ggecddcd_gcn_forward.1} parent=51 // loop_header_branch
                %208 = sbr.rel (%p206) target = $region59
              $region56: #{_ggecddcd_gcn_forward.1} parent=51 // loop_body
                %v212 = vld [vmem:[%s210] sm:$0xff]
                %213 = vst [vmem:[%s211] sm:$0xff] %v212
                %v214 = vld [vmem:[%s210 + $0x8] sm:$0xff]
                %215 = vst [vmem:[%s211 + $0x8] sm:$0xff] %v214
                %v216 = vld [vmem:[%s210 + $0x10] sm:$0xff]
                %217 = vst [vmem:[%s211 + $0x10] sm:$0xff] %v216
                %v218 = vld [vmem:[%s210 + $0x18] sm:$0xff]
                %219 = vst [vmem:[%s211 + $0x18] sm:$0xff] %v218
                %v220 = vld [vmem:[%s210 + $0x20] sm:$0xff]
                %221 = vst [vmem:[%s211 + $0x20] sm:$0xff] %v220
                %v222 = vld [vmem:[%s210 + $0x28] sm:$0xff]
                %223 = vst [vmem:[%s211 + $0x28] sm:$0xff] %v222
                %v224 = vld [vmem:[%s210 + $0x30] sm:$0xff]
                %225 = vst [vmem:[%s211 + $0x30] sm:$0xff] %v224
                %v226 = vld [vmem:[%s210 + $0x38] sm:$0xff]
                %227 = vst [vmem:[%s211 + $0x38] sm:$0xff] %v226
              $region57: #{_ggecddcd_gcn_forward.1} parent=51 // loop_footer
                %s209 = sadd.s32 1, %s205
              $region58: #{_ggecddcd_gcn_forward.1} parent=51 // loop_footer_branch
                %204 = sbr.rel target = $region54
              $region59: #{_ggecddcd_gcn_forward.1} parent=51 // loop_exit
                _
            $region52: #{_ggecddcd_gcn_forward.1} parent=36 // pred_fallthru
              _
            %p228 = pneg %p200
            // Predicated region
            $region60: #{_ggecddcd_gcn_forward.1} parent=36 // pred_check
              _
            $region61: #{_ggecddcd_gcn_forward.1} parent=36 // pred_check_branch
              %230 = sbr.rel (%p200) target = $region63
            $region62: #{_ggecddcd_gcn_forward.1} parent=36 // pred_region
              %s231 = sand.u32 64, 7
            $region63: #{_ggecddcd_gcn_forward.1} parent=36 // pred_fallthru
              _
          $region37: #{_ggecddcd_gcn_forward.1} parent=33 // pred_fallthru
            _
          // Predicated region
          $region38: #{_ggecddcd_gcn_forward.1} parent=33 // pred_check
            %p185 = pneg %p181
          $region39: #{_ggecddcd_gcn_forward.1} parent=33 // pred_check_branch
            %187 = sbr.rel (%p185) target = $region41
          $region40: #{_ggecddcd_gcn_forward.1} parent=33 // pred_region
            %s188 = sshllo.u32 0, 64
            loop: start=0, step=1, limit=1
            $region42: #{_ggecddcd_gcn_forward.1} parent=40 // loop_pre_header
              _
            $region43: #{_ggecddcd_gcn_forward.1} parent=40 // loop_header
              %s190 = sphi 0, %s194
              %p191 = scmp.ge.s32.totalorder %s190, 1
              %s195 = sphi %s0, %s0
              %s196 = sphi [#allocation3], [#allocation3]
            $region44: #{_ggecddcd_gcn_forward.1} parent=40 // loop_header_branch
              %193 = sbr.rel (%p191) target = $region48
            $region45: #{_ggecddcd_gcn_forward.1} parent=40 // loop_body
              %v197 = vld [vmem:[%s195] sm:%s188]
              %198 = vst [vmem:[%s196] sm:%s188] %v197
            $region46: #{_ggecddcd_gcn_forward.1} parent=40 // loop_footer
              %s194 = sadd.s32 1, %s190
            $region47: #{_ggecddcd_gcn_forward.1} parent=40 // loop_footer_branch
              %189 = sbr.rel target = $region43
            $region48: #{_ggecddcd_gcn_forward.1} parent=40 // loop_exit
              _
          $region41: #{_ggecddcd_gcn_forward.1} parent=33 // pred_fallthru
            _
          // Predicated region
          $region64: #{_ggecddcd_gcn_forward.1} parent=33 // pred_check
            _
          $region65: #{_ggecddcd_gcn_forward.1} parent=33 // pred_check_branch
            %234 = sbr.rel (0) target = $region67
          $region66: #{_ggecddcd_gcn_forward.1} parent=33 // pred_region
            %235 = vsyncadd [#allocation4], 1024
          $region67: #{_ggecddcd_gcn_forward.1} parent=33 // pred_fallthru
            _
          %s236 = smul.u32 4, 16
          %s237 = smul.u32 %s236, 1
          %s238 = sshll.u32 %s237, 4
          %239 = dma.done [#allocation4], %s238
        $region68: #{_ggecddcd_gcn_forward.1} parent=31
          #allocation6 [shape = 's32[1]{0}', space=sflag, size = 0x4, scoped, tag = 'scoped memory for _ggecddcd_gcn_forward.1']
          %p241 = scmp.lt.u32.totalorder 64, 8
          %p242 = pneg %p241
          // Predicated region
          $region69: #{_ggecddcd_gcn_forward.1} parent=68 // pred_check
            _
          $region70: #{_ggecddcd_gcn_forward.1} parent=68 // pred_check_branch
            %244 = sbr.rel (%p241) target = $region72
          $region71: #{_ggecddcd_gcn_forward.1} parent=68 // pred_region
            %s259 = sand.u32 64, 7
            %p260 = scmp.eq.s32.totalorder %s259, 0
            // Predicated region
            $region84: #{_ggecddcd_gcn_forward.1} parent=71 // pred_check
              %p261 = pneg %p260
            $region85: #{_ggecddcd_gcn_forward.1} parent=71 // pred_check_branch
              %263 = sbr.rel (%p261) target = $region87
            $region86: #{_ggecddcd_gcn_forward.1} parent=71 // pred_region
              loop: start=0, step=1, limit=1
              $region88: #{_ggecddcd_gcn_forward.1} parent=86 // loop_pre_header
                _
              $region89: #{_ggecddcd_gcn_forward.1} parent=86 // loop_header
                %s265 = sphi 0, %s269
                %p266 = scmp.ge.s32.totalorder %s265, 1
                %s270 = sphi %s1, %s1
                %s271 = sphi [#allocation2], [#allocation2]
              $region90: #{_ggecddcd_gcn_forward.1} parent=86 // loop_header_branch
                %268 = sbr.rel (%p266) target = $region94
              $region91: #{_ggecddcd_gcn_forward.1} parent=86 // loop_body
                %v272 = vld [vmem:[%s270] sm:$0xff]
                %273 = vst [vmem:[%s271] sm:$0xff] %v272
                %v274 = vld [vmem:[%s270 + $0x8] sm:$0xff]
                %275 = vst [vmem:[%s271 + $0x8] sm:$0xff] %v274
                %v276 = vld [vmem:[%s270 + $0x10] sm:$0xff]
                %277 = vst [vmem:[%s271 + $0x10] sm:$0xff] %v276
                %v278 = vld [vmem:[%s270 + $0x18] sm:$0xff]
                %279 = vst [vmem:[%s271 + $0x18] sm:$0xff] %v278
                %v280 = vld [vmem:[%s270 + $0x20] sm:$0xff]
                %281 = vst [vmem:[%s271 + $0x20] sm:$0xff] %v280
                %v282 = vld [vmem:[%s270 + $0x28] sm:$0xff]
                %283 = vst [vmem:[%s271 + $0x28] sm:$0xff] %v282
                %v284 = vld [vmem:[%s270 + $0x30] sm:$0xff]
                %285 = vst [vmem:[%s271 + $0x30] sm:$0xff] %v284
                %v286 = vld [vmem:[%s270 + $0x38] sm:$0xff]
                %287 = vst [vmem:[%s271 + $0x38] sm:$0xff] %v286
              $region92: #{_ggecddcd_gcn_forward.1} parent=86 // loop_footer
                %s269 = sadd.s32 1, %s265
              $region93: #{_ggecddcd_gcn_forward.1} parent=86 // loop_footer_branch
                %264 = sbr.rel target = $region89
              $region94: #{_ggecddcd_gcn_forward.1} parent=86 // loop_exit
                _
            $region87: #{_ggecddcd_gcn_forward.1} parent=71 // pred_fallthru
              _
            %p288 = pneg %p260
            // Predicated region
            $region95: #{_ggecddcd_gcn_forward.1} parent=71 // pred_check
              _
            $region96: #{_ggecddcd_gcn_forward.1} parent=71 // pred_check_branch
              %290 = sbr.rel (%p260) target = $region98
            $region97: #{_ggecddcd_gcn_forward.1} parent=71 // pred_region
              %s291 = sand.u32 64, 7
            $region98: #{_ggecddcd_gcn_forward.1} parent=71 // pred_fallthru
              _
          $region72: #{_ggecddcd_gcn_forward.1} parent=68 // pred_fallthru
            _
          // Predicated region
          $region73: #{_ggecddcd_gcn_forward.1} parent=68 // pred_check
            %p245 = pneg %p241
          $region74: #{_ggecddcd_gcn_forward.1} parent=68 // pred_check_branch
            %247 = sbr.rel (%p245) target = $region76
          $region75: #{_ggecddcd_gcn_forward.1} parent=68 // pred_region
            %s248 = sshllo.u32 0, 64
            loop: start=0, step=1, limit=1
            $region77: #{_ggecddcd_gcn_forward.1} parent=75 // loop_pre_header
              _
            $region78: #{_ggecddcd_gcn_forward.1} parent=75 // loop_header
              %s250 = sphi 0, %s254
              %p251 = scmp.ge.s32.totalorder %s250, 1
              %s255 = sphi %s1, %s1
              %s256 = sphi [#allocation2], [#allocation2]
            $region79: #{_ggecddcd_gcn_forward.1} parent=75 // loop_header_branch
              %253 = sbr.rel (%p251) target = $region83
            $region80: #{_ggecddcd_gcn_forward.1} parent=75 // loop_body
              %v257 = vld [vmem:[%s255] sm:%s248]
              %258 = vst [vmem:[%s256] sm:%s248] %v257
            $region81: #{_ggecddcd_gcn_forward.1} parent=75 // loop_footer
              %s254 = sadd.s32 1, %s250
            $region82: #{_ggecddcd_gcn_forward.1} parent=75 // loop_footer_branch
              %249 = sbr.rel target = $region78
            $region83: #{_ggecddcd_gcn_forward.1} parent=75 // loop_exit
              _
          $region76: #{_ggecddcd_gcn_forward.1} parent=68 // pred_fallthru
            _
          // Predicated region
          $region99: #{_ggecddcd_gcn_forward.1} parent=68 // pred_check
            _
          $region100: #{_ggecddcd_gcn_forward.1} parent=68 // pred_check_branch
            %294 = sbr.rel (0) target = $region102
          $region101: #{_ggecddcd_gcn_forward.1} parent=68 // pred_region
            %295 = vsyncadd [#allocation6], 1024
          $region102: #{_ggecddcd_gcn_forward.1} parent=68 // pred_fallthru
            _
          %s296 = smul.u32 4, 16
          %s297 = smul.u32 %s296, 1
          %s298 = sshll.u32 %s297, 4
          %299 = dma.done [#allocation6], %s298
      $region32: #{_ggecddcd_gcn_forward.1} parent=27 // pred_fallthru
        _
      %s300 = smul.u32 %s20, 128
      %p301 = scmp.lt.s32.totalorder %s19, 0
      %s302 = ssub.s32 0, %s19
      %s303 = scalar_select %p301, %s302, %s19
      %s304 = sand.u32 %s303, 1
      %s305 = ssub.s32 0, %s304
      %s306 = scalar_select %p301, %s305, %s304
      %s307 = ssub.s32 1, %s306
      %s308 = sshra.s32 %s300, 4
      %s309 = sand.u32 %s300, 15
      %s310 = smul.addr %s308, 8
      %s311 = scalar_lea.vmem [#allocation3], %s310
      %v312 = vld [vmem:[%s311] sm:$0xff]
      %v313 = vld [vmem:[%s311 + $0x8] sm:$0xff]
      %v314 = vld [vmem:[%s311 + $0x10] sm:$0xff]
      %v315 = vld [vmem:[%s311 + $0x18] sm:$0xff]
      %v316 = vld [vmem:[%s311 + $0x20] sm:$0xff]
      %v317 = vld [vmem:[%s311 + $0x28] sm:$0xff]
      %v318 = vld [vmem:[%s311 + $0x30] sm:$0xff]
      %v319 = vld [vmem:[%s311 + $0x38] sm:$0xff]
      %s320 = smul.u32 %s306, 8
      %s321 = smul.addr %s320, 8
      %s322 = scalar_lea.vmem [#allocation2], %s321
      %v323 = vld [vmem:[%s322] sm:$0xff]
      %v324 = vld [vmem:[%s322 + $0x8] sm:$0xff]
      %v325 = vld [vmem:[%s322 + $0x10] sm:$0xff]
      %v326 = vld [vmem:[%s322 + $0x18] sm:$0xff]
      %v327 = vld [vmem:[%s322 + $0x20] sm:$0xff]
      %v328 = vld [vmem:[%s322 + $0x28] sm:$0xff]
      %v329 = vld [vmem:[%s322 + $0x30] sm:$0xff]
      %v330 = vld [vmem:[%s322 + $0x38] sm:$0xff]
      %v331 = vld [vmem:[%s166] sm:$0x1]
      %v333 = vlaneseq
      %v334 = vshrl.u32 %v333, 7
      %v335 = vsub.s32 0, %v334
      %v336 = vrot.slane %v331, %v335
      %338 = vmatprep.subr.bf16.mxu0 0
      %339 = vmatpush1.bf16.msra.mxu0 %v323
      %340 = vmatprep.subr.bf16.mxu0 0
      %341 = vmatpush1.bf16.msra.mxu0 %v324
      %342 = vmatprep.subr.bf16.mxu0 0
      %343 = vmatpush1.bf16.msra.mxu0 %v325
      %344 = vmatprep.subr.bf16.mxu0 0
      %345 = vmatpush1.bf16.msra.mxu0 %v326
      %346 = vmatprep.subr.bf16.mxu0 0
      %347 = vmatpush1.bf16.msra.mxu0 %v327
      %348 = vmatprep.subr.bf16.mxu0 0
      %349 = vmatpush1.bf16.msra.mxu0 %v328
      %350 = vmatprep.subr.bf16.mxu0 0
      %351 = vmatpush1.bf16.msra.mxu0 %v329
      %352 = vmatprep.subr.bf16.mxu0 0
      %353 = vmatpush1.bf16.msra.mxu0 %v330
      %354 = vmatprep.subr.bf16.mxu0 0
      %355 = vmatpush1.bf16.msra.mxu0 0
      %356 = vmatprep.subr.bf16.mxu0 0
      %357 = vmatpush1.bf16.msra.mxu0 0
      %358 = vmatprep.subr.bf16.mxu0 0
      %359 = vmatpush1.bf16.msra.mxu0 0
      %360 = vmatprep.subr.bf16.mxu0 0
      %361 = vmatpush1.bf16.msra.mxu0 0
      %362 = vmatprep.subr.bf16.mxu0 0
      %363 = vmatpush1.bf16.msra.mxu0 0
      %364 = vmatprep.subr.bf16.mxu0 0
      %365 = vmatpush1.bf16.msra.mxu0 0
      %366 = vmatprep.subr.bf16.mxu0 0
      %367 = vmatpush1.bf16.msra.mxu0 0
      %368 = vmatprep.subr.bf16.mxu0 0
      %369 = vmatpush1.bf16.msra.mxu0 0
      %370 = vmatprep.mubr.bf16.mxu0 0
      %371 = vmatmul.mubr.bf16.gmra.mrb[0].mxu0 %v312
      %v372 = vpop.f32.mrb[0].mxu0
      %v373 = vadd.f32 %v336, %v372
      %v374 = vpop.f32.mrb[0].mxu0
      %v375 = vpop.f32.mrb[0].mxu0
      %v376 = vadd.f32 %v336, %v375
      %v377 = vpop.f32.mrb[0].mxu0
      %378 = vmatprep.mubr.bf16.mxu0 0
      %379 = vmatmul.mubr.bf16.gmra.mrb[0].mxu0 %v313
      %v380 = vpop.f32.mrb[0].mxu0
      %v381 = vadd.f32 %v336, %v380
      %v382 = vpop.f32.mrb[0].mxu0
      %v383 = vpop.f32.mrb[0].mxu0
      %v384 = vadd.f32 %v336, %v383
      %v385 = vpop.f32.mrb[0].mxu0
      %386 = vmatprep.mubr.bf16.mxu0 0
      %387 = vmatmul.mubr.bf16.gmra.mrb[0].mxu0 %v314
      %v388 = vpop.f32.mrb[0].mxu0
      %v389 = vadd.f32 %v336, %v388
      %v390 = vpop.f32.mrb[0].mxu0
      %v391 = vpop.f32.mrb[0].mxu0
      %v392 = vadd.f32 %v336, %v391
      %v393 = vpop.f32.mrb[0].mxu0
      %394 = vmatprep.mubr.bf16.mxu0 0
      %395 = vmatmul.mubr.bf16.gmra.mrb[0].mxu0 %v315
      %v396 = vpop.f32.mrb[0].mxu0
      %v397 = vadd.f32 %v336, %v396
      %v398 = vpop.f32.mrb[0].mxu0
      %v399 = vpop.f32.mrb[0].mxu0
      %v400 = vadd.f32 %v336, %v399
      %v401 = vpop.f32.mrb[0].mxu0
      %402 = vmatprep.mubr.bf16.mxu0 0
      %403 = vmatmul.mubr.bf16.gmra.mrb[0].mxu0 %v316
      %v404 = vpop.f32.mrb[0].mxu0
      %v405 = vadd.f32 %v336, %v404
      %v406 = vpop.f32.mrb[0].mxu0
      %v407 = vpop.f32.mrb[0].mxu0
      %v408 = vadd.f32 %v336, %v407
      %v409 = vpop.f32.mrb[0].mxu0
      %410 = vmatprep.mubr.bf16.mxu0 0
      %411 = vmatmul.mubr.bf16.gmra.mrb[0].mxu0 %v317
      %v412 = vpop.f32.mrb[0].mxu0
      %v413 = vadd.f32 %v336, %v412
      %v414 = vpop.f32.mrb[0].mxu0
      %v415 = vpop.f32.mrb[0].mxu0
      %v416 = vadd.f32 %v336, %v415
      %v417 = vpop.f32.mrb[0].mxu0
      %418 = vmatprep.mubr.bf16.mxu0 0
      %419 = vmatmul.mubr.bf16.gmra.mrb[0].mxu0 %v318
      %v420 = vpop.f32.mrb[0].mxu0
      %v421 = vadd.f32 %v336, %v420
      %v422 = vpop.f32.mrb[0].mxu0
      %v423 = vpop.f32.mrb[0].mxu0
      %v424 = vadd.f32 %v336, %v423
      %v425 = vpop.f32.mrb[0].mxu0
      %426 = vmatprep.mubr.bf16.mxu0 0
      %427 = vmatmul.mubr.bf16.gmra.mrb[0].mxu0 %v319
      %v428 = vpop.f32.mrb[0].mxu0
      %v429 = vadd.f32 %v336, %v428
      %v430 = vpop.f32.mrb[0].mxu0
      %v431 = vpop.f32.mrb[0].mxu0
      %v432 = vadd.f32 %v336, %v431
      %v433 = vpop.f32.mrb[0].mxu0
      %434 = vdwg.mxu0
      %v435 = vmax.f32 %v373, 0.0
      %v436 = vmax.f32 %v376, 0.0
      %v437 = vmax.f32 %v381, 0.0
      %v438 = vmax.f32 %v384, 0.0
      %v439 = vmax.f32 %v389, 0.0
      %v440 = vmax.f32 %v392, 0.0
      %v441 = vmax.f32 %v397, 0.0
      %v442 = vmax.f32 %v400, 0.0
      %v443 = vmax.f32 %v405, 0.0
      %v444 = vmax.f32 %v408, 0.0
      %v445 = vmax.f32 %v413, 0.0
      %v446 = vmax.f32 %v416, 0.0
      %v447 = vmax.f32 %v421, 0.0
      %v448 = vmax.f32 %v424, 0.0
      %v449 = vmax.f32 %v429, 0.0
      %v450 = vmax.f32 %v432, 0.0
      %p451 = scmp.eq.s32.totalorder %s19, 1
      %s452 = scalar_select %p451, 1, 0
      %v453 = vstv %s452
      %vm454 = vcmp.eq.s32.totalorder %v453, 1
      %v455 = vsel %vm454, %v373, %v435
      %v456 = vsel %vm454, %v376, %v436
      %v457 = vsel %vm454, %v381, %v437
      %v458 = vsel %vm454, %v384, %v438
      %v459 = vsel %vm454, %v389, %v439
      %v460 = vsel %vm454, %v392, %v440
      %v461 = vsel %vm454, %v397, %v441
      %v462 = vsel %vm454, %v400, %v442
      %v463 = vsel %vm454, %v405, %v443
      %v464 = vsel %vm454, %v408, %v444
      %v465 = vsel %vm454, %v413, %v445
      %v466 = vsel %vm454, %v416, %v446
      %v467 = vsel %vm454, %v421, %v447
      %v468 = vsel %vm454, %v424, %v448
      %v469 = vsel %vm454, %v429, %v449
      %v470 = vsel %vm454, %v432, %v450
      %471 = vst [vmem:[%s171] sm:$0xff] %v455
      %472 = vst [vmem:[%s171 + $0x8] sm:$0xff] %v456
      %473 = vst [vmem:[%s171 + $0x10] sm:$0xff] %v457
      %474 = vst [vmem:[%s171 + $0x18] sm:$0xff] %v458
      %475 = vst [vmem:[%s171 + $0x20] sm:$0xff] %v459
      %476 = vst [vmem:[%s171 + $0x28] sm:$0xff] %v460
      %477 = vst [vmem:[%s171 + $0x30] sm:$0xff] %v461
      %478 = vst [vmem:[%s171 + $0x38] sm:$0xff] %v462
      %479 = vst [vmem:[%s171 + $0x40] sm:$0xff] %v463
      %480 = vst [vmem:[%s171 + $0x48] sm:$0xff] %v464
      %481 = vst [vmem:[%s171 + $0x50] sm:$0xff] %v465
      %482 = vst [vmem:[%s171 + $0x58] sm:$0xff] %v466
      %483 = vst [vmem:[%s171 + $0x60] sm:$0xff] %v467
      %484 = vst [vmem:[%s171 + $0x68] sm:$0xff] %v468
      %485 = vst [vmem:[%s171 + $0x70] sm:$0xff] %v469
      %486 = vst [vmem:[%s171 + $0x78] sm:$0xff] %v470
      %p487 = scmp.ne.s32.totalorder %s19, 1
      // Predicated region
      $region103: #{_ggecddcd_gcn_forward.1} parent=27 // pred_check
        %p488 = pneg %p487
      $region104: #{_ggecddcd_gcn_forward.1} parent=27 // pred_check_branch
        %490 = sbr.rel (%p488) target = $region106
      $region105: #{_ggecddcd_gcn_forward.1} parent=27 // pred_region
        %v491 = vpack.c.bf16 %v436, %v435
        %v492 = vpack.c.bf16 %v438, %v437
        %v493 = vpack.c.bf16 %v440, %v439
        %v494 = vpack.c.bf16 %v442, %v441
        %v495 = vpack.c.bf16 %v444, %v443
        %v496 = vpack.c.bf16 %v446, %v445
        %v497 = vpack.c.bf16 %v448, %v447
        %v498 = vpack.c.bf16 %v450, %v449
        %v499 = vld [vmem:[%s163] sm:$0xf]
        %v500 = vld [vmem:[%s163 + $0x4] sm:$0xf]
        %v501 = vld [vmem:[%s163 + $0x8] sm:$0xf]
        %v502 = vld [vmem:[%s163 + $0xc] sm:$0xf]
        %v503 = vld [vmem:[%s163 + $0x10] sm:$0xf]
        %v504 = vld [vmem:[%s163 + $0x14] sm:$0xf]
        %v505 = vld [vmem:[%s163 + $0x18] sm:$0xf]
        %v506 = vld [vmem:[%s163 + $0x1c] sm:$0xf]
        %v507 = vld [vmem:[%s163 + $0x20] sm:$0xf]
        %v508 = vld [vmem:[%s163 + $0x24] sm:$0xf]
        %v509 = vld [vmem:[%s163 + $0x28] sm:$0xf]
        %v510 = vld [vmem:[%s163 + $0x2c] sm:$0xf]
        %v511 = vld [vmem:[%s163 + $0x30] sm:$0xf]
        %v512 = vld [vmem:[%s163 + $0x34] sm:$0xf]
        %v513 = vld [vmem:[%s163 + $0x38] sm:$0xf]
        %v514 = vld [vmem:[%s163 + $0x3c] sm:$0xf]
        %v531 = vunpack.c.l.b16 %v499
        %v532 = vunpack.c.l.b16 %v500
        %v533 = vunpack.c.l.b16 %v501
        %v534 = vunpack.c.l.b16 %v502
        %v535 = vunpack.c.l.b16 %v503
        %v536 = vunpack.c.l.b16 %v504
        %v537 = vunpack.c.l.b16 %v505
        %v538 = vunpack.c.l.b16 %v506
        %v539 = vunpack.c.l.b16 %v507
        %v540 = vunpack.c.l.b16 %v508
        %v541 = vunpack.c.l.b16 %v509
        %v542 = vunpack.c.l.b16 %v510
        %v543 = vunpack.c.l.b16 %v511
        %v544 = vunpack.c.l.b16 %v512
        %v545 = vunpack.c.l.b16 %v513
        %v546 = vunpack.c.l.b16 %v514
        %v547 = vpack.c.b16 %v532, %v531
        %v548 = vpack.c.b16 %v534, %v533
        %v549 = vpack.c.b16 %v536, %v535
        %v550 = vpack.c.b16 %v538, %v537
        %v551 = vpack.c.b16 %v540, %v539
        %v552 = vpack.c.b16 %v542, %v541
        %v553 = vpack.c.b16 %v544, %v543
        %v554 = vpack.c.b16 %v546, %v545
        %563 = vmatprep.subr.bf16.mxu0 0
        %564 = vmatpush1.bf16.msra.mxu0 %v547
        %565 = vmatprep.subr.bf16.mxu0 0
        %566 = vmatpush1.bf16.msra.mxu0 %v548
        %567 = vmatprep.subr.bf16.mxu0 0
        %568 = vmatpush1.bf16.msra.mxu0 %v549
        %569 = vmatprep.subr.bf16.mxu0 0
        %570 = vmatpush1.bf16.msra.mxu0 %v550
        %571 = vmatprep.subr.bf16.mxu0 0
        %572 = vmatpush1.bf16.msra.mxu0 %v551
        %573 = vmatprep.subr.bf16.mxu0 0
        %574 = vmatpush1.bf16.msra.mxu0 %v552
        %575 = vmatprep.subr.bf16.mxu0 0
        %576 = vmatpush1.bf16.msra.mxu0 %v553
        %577 = vmatprep.subr.bf16.mxu0 0
        %578 = vmatpush1.bf16.msra.mxu0 %v554
        %579 = vmatprep.subr.bf16.mxu0 0
        %580 = vmatpush1.bf16.msra.mxu0 0
        %581 = vmatprep.subr.bf16.mxu0 0
        %582 = vmatpush1.bf16.msra.mxu0 0
        %583 = vmatprep.subr.bf16.mxu0 0
        %584 = vmatpush1.bf16.msra.mxu0 0
        %585 = vmatprep.subr.bf16.mxu0 0
        %586 = vmatpush1.bf16.msra.mxu0 0
        %587 = vmatprep.subr.bf16.mxu0 0
        %588 = vmatpush1.bf16.msra.mxu0 0
        %589 = vmatprep.subr.bf16.mxu0 0
        %590 = vmatpush1.bf16.msra.mxu0 0
        %591 = vmatprep.subr.bf16.mxu0 0
        %592 = vmatpush1.bf16.msra.mxu0 0
        %593 = vmatprep.subr.bf16.mxu0 0
        %594 = vmatpush1.bf16.msra.mxu0 0
        %595 = vmatprep.mubr.bf16.mxu0 0
        %596 = vmatmul.mubr.bf16.gmra.mrb[0].mxu0 %v491
        %v597 = vpop.f32.mrb[0].mxu0
        %v598 = vadd.f32 0.0, %v597
        %v599 = vpop.f32.mrb[0].mxu0
        %v600 = vpop.f32.mrb[0].mxu0
        %v601 = vadd.f32 0.0, %v600
        %v602 = vpop.f32.mrb[0].mxu0
        %603 = vmatprep.mubr.bf16.mxu0 0
        %604 = vmatmul.mubr.bf16.gmra.mrb[0].mxu0 %v492
        %v605 = vpop.f32.mrb[0].mxu0
        %v606 = vadd.f32 0.0, %v605
        %v607 = vpop.f32.mrb[0].mxu0
        %v608 = vpop.f32.mrb[0].mxu0
        %v609 = vadd.f32 0.0, %v608
        %v610 = vpop.f32.mrb[0].mxu0
        %611 = vmatprep.mubr.bf16.mxu0 0
        %612 = vmatmul.mubr.bf16.gmra.mrb[0].mxu0 %v493
        %v613 = vpop.f32.mrb[0].mxu0
        %v614 = vadd.f32 0.0, %v613
        %v615 = vpop.f32.mrb[0].mxu0
        %v616 = vpop.f32.mrb[0].mxu0
        %v617 = vadd.f32 0.0, %v616
        %v618 = vpop.f32.mrb[0].mxu0
        %619 = vmatprep.mubr.bf16.mxu0 0
        %620 = vmatmul.mubr.bf16.gmra.mrb[0].mxu0 %v494
        %v621 = vpop.f32.mrb[0].mxu0
        %v622 = vadd.f32 0.0, %v621
        %v623 = vpop.f32.mrb[0].mxu0
        %v624 = vpop.f32.mrb[0].mxu0
        %v625 = vadd.f32 0.0, %v624
        %v626 = vpop.f32.mrb[0].mxu0
        %627 = vmatprep.mubr.bf16.mxu0 0
        %628 = vmatmul.mubr.bf16.gmra.mrb[0].mxu0 %v495
        %v629 = vpop.f32.mrb[0].mxu0
        %v630 = vadd.f32 0.0, %v629
        %v631 = vpop.f32.mrb[0].mxu0
        %v632 = vpop.f32.mrb[0].mxu0
        %v633 = vadd.f32 0.0, %v632
        %v634 = vpop.f32.mrb[0].mxu0
        %635 = vmatprep.mubr.bf16.mxu0 0
        %636 = vmatmul.mubr.bf16.gmra.mrb[0].mxu0 %v496
        %v637 = vpop.f32.mrb[0].mxu0
        %v638 = vadd.f32 0.0, %v637
        %v639 = vpop.f32.mrb[0].mxu0
        %v640 = vpop.f32.mrb[0].mxu0
        %v641 = vadd.f32 0.0, %v640
        %v642 = vpop.f32.mrb[0].mxu0
        %643 = vmatprep.mubr.bf16.mxu0 0
        %644 = vmatmul.mubr.bf16.gmra.mrb[0].mxu0 %v497
        %v645 = vpop.f32.mrb[0].mxu0
        %v646 = vadd.f32 0.0, %v645
        %v647 = vpop.f32.mrb[0].mxu0
        %v648 = vpop.f32.mrb[0].mxu0
        %v649 = vadd.f32 0.0, %v648
        %v650 = vpop.f32.mrb[0].mxu0
        %651 = vmatprep.mubr.bf16.mxu0 0
        %652 = vmatmul.mubr.bf16.gmra.mrb[0].mxu0 %v498
        %v653 = vpop.f32.mrb[0].mxu0
        %v654 = vadd.f32 0.0, %v653
        %v655 = vpop.f32.mrb[0].mxu0
        %v656 = vpop.f32.mrb[0].mxu0
        %v657 = vadd.f32 0.0, %v656
        %v658 = vpop.f32.mrb[0].mxu0
        %659 = vdwg.mxu0
        %v660 = vpack.c.bf16 %v601, %v598
        %v661 = vpack.c.bf16 %v609, %v606
        %v662 = vpack.c.bf16 %v617, %v614
        %v663 = vpack.c.bf16 %v625, %v622
        %v664 = vpack.c.bf16 %v633, %v630
        %v665 = vpack.c.bf16 %v641, %v638
        %v666 = vpack.c.bf16 %v649, %v646
        %v667 = vpack.c.bf16 %v657, %v654
        %s668 = smul.u32 %s307, 8
        %s669 = sadd.s32 %s308, %s668
        %s670 = smul.addr %s669, 8
        %s671 = scalar_lea.vmem [#allocation2], %s670
        %672 = vst [vmem:[%s671] sm:$0xff] %v660
        %673 = vst [vmem:[%s671 + $0x8] sm:$0xff] %v661
        %674 = vst [vmem:[%s671 + $0x10] sm:$0xff] %v662
        %675 = vst [vmem:[%s671 + $0x18] sm:$0xff] %v663
        %676 = vst [vmem:[%s671 + $0x20] sm:$0xff] %v664
        %677 = vst [vmem:[%s671 + $0x28] sm:$0xff] %v665
        %678 = vst [vmem:[%s671 + $0x30] sm:$0xff] %v666
        %679 = vst [vmem:[%s671 + $0x38] sm:$0xff] %v667
      $region106: #{_ggecddcd_gcn_forward.1} parent=27 // pred_fallthru
        _
      %s680 = smul.u32 16, %s20
      %p681 = scmp.lt.s32.totalorder %s680, 15
      %s682 = scalar_select %p681, %s680, 15
      %s683 = smul.addr %s682, 8
      %s684 = scalar_lea.vmem %s4, %s683
      // Predicated region
      $region107: #{_ggecddcd_gcn_forward.1} parent=27 // pred_check
        %p685 = pneg %p97
      $region108: #{_ggecddcd_gcn_forward.1} parent=27 // pred_check_branch
        %687 = sbr.rel (%p685) target = $region110
      $region109: #{_ggecddcd_gcn_forward.1} parent=27 // pred_region
        %s688 = smul.u32 16, %s20
      $region110: #{_ggecddcd_gcn_forward.1} parent=27 // pred_fallthru
        _
      // Predicated region
      $region111: #{_ggecddcd_gcn_forward.1} parent=27 // pred_check
        %p689 = pneg %p97
      $region112: #{_ggecddcd_gcn_forward.1} parent=27 // pred_check_branch
        %691 = sbr.rel (%p689) target = $region114
      $region113: #{_ggecddcd_gcn_forward.1} parent=27 // pred_region
        %s692 = smul.u32 16, %s20
        %p693 = scmp.lt.s32.totalorder %s692, 15
        %s694 = scalar_select %p693, %s692, 15
        %s695 = smul.addr %s694, 8
        %s696 = scalar_lea.vmem %s4, %s695
      $region114: #{_ggecddcd_gcn_forward.1} parent=27 // pred_fallthru
        _
    $region28: #{_ggecddcd_gcn_forward.1} parent=5 // pred_fallthru
      _
    %p697 = scmp.le.s32.totalorder 2, %s10
    // Predicated region
    $region115: #{_ggecddcd_gcn_forward.1} parent=5 // pred_check
      %p698 = pneg %p697
    $region116: #{_ggecddcd_gcn_forward.1} parent=5 // pred_check_branch
      %700 = sbr.rel (%p698) target = $region118
    $region117: #{_ggecddcd_gcn_forward.1} parent=5 // pred_region
      %s701 = ssub.s32 %s10, 2
    $region118: #{_ggecddcd_gcn_forward.1} parent=5 // pred_fallthru
      _
  $region6: #{_ggecddcd_gcn_forward.1} parent=0 // loop_footer
    %s14 = sadd.s32 1, %s10
  $region7: #{_ggecddcd_gcn_forward.1} parent=0 // loop_footer_branch
    %9 = sbr.rel target = $region3
  $region8: #{_ggecddcd_gcn_forward.1} parent=0 // loop_exit
    _

</llo_original>
